<compile_context>
chip_gen: v6e
topology: v6e:2x2x1
jax: 0.10.0
libtpu: 0.0.40
codegen_flags: <defaults>
</compile_context>

<pallas_src>
import functools

import jax
import jax.numpy as jnp
from jax.experimental import pallas as pl
from jax.experimental.pallas import tpu as pltpu

_MIB = 1024 * 1024


def _triplet_loss_kernel(a_ref, p_ref, n_ref, out_ref, *, margin, batch,
                         tile_rows, steps_per_split, need_mask):
    s = pl.program_id(0)   # batch split (parallel; one per TensorCore on v7x)
    i = pl.program_id(1)   # reduction step within the split (arbitrary)

    # Output block (1,1,1) for this split stays resident across the i axis:
    # zero it on the first step, accumulate every step.
    @pl.when(i == 0)
    def _():
        out_ref[...] = jnp.zeros_like(out_ref)

    a = a_ref[...].astype(jnp.float32)
    p = p_ref[...].astype(jnp.float32)
    n = n_ref[...].astype(jnp.float32)

    # Fused distance difference:
    #   dp - dn = sum_d[(a-p)^2 - (a-n)^2] = sum_d[(n - p) * (2a - p - n)]
    # -> one elementwise product and ONE lane reduction per tile.
    # TODO(synk): if a v7x bundle dump shows the cross-lane reduce saturating
    # (bf16, small D), offload this reduction to the idle MXU via
    # jnp.dot(prod, ones((D, 1), f32)).
    diff = jnp.sum((n - p) * (2.0 * a - p - n), axis=1, keepdims=True)   # (TB, 1)
    losses = jnp.maximum(diff + jnp.float32(margin), 0.0)                # (TB, 1)

    if need_mask:
        # Zero rows past the true batch (the single partial tail block).
        base = (s * steps_per_split + i) * tile_rows
        row_ids = base + jax.lax.broadcasted_iota(jnp.int32, losses.shape, 0)
        losses = jnp.where(row_ids < batch, losses, 0.0)

    out_ref[...] += jnp.sum(losses, axis=0, keepdims=True).reshape(1, 1, 1)


def _tpu_vmem_capacity():
    """Per-TensorCore VMEM bytes; conservative (v7x) fallback if unknown."""
    try:
        info = pltpu.get_tpu_info()
        for attr in ("vmem_capacity_bytes", "vmem_bytes", "vmem_size_bytes"):
            v = getattr(info, attr, None)
            if v:
                return int(v)
    except Exception:
        pass
    return 64 * _MIB


def _tpu_num_tensorcores():
    """TensorCores per chip; default 1 (v5e/v6e) if unknown."""
    try:
        info = pltpu.get_tpu_info()
        for attr in ("num_tensorcores", "tensorcore_count", "num_cores",
                     "cores_per_chip", "num_cores_per_chip"):
            v = getattr(info, attr, None)
            if v:
                return int(v)
    except Exception:
        pass
    return 1


def _pick_tile_rows(batch, feat, itemsize, vmem_bytes):
    row_bytes = feat * itemsize
    per_row = 3 * 2 * row_bytes            # 3 inputs x 2 pipeline buffers
    if vmem_bytes <= 64 * _MIB:            # v7x: 64 MiB VMEM per TensorCore
        input_budget = 24 * _MIB
        target_block = 4 * _MIB
    else:                                  # v5e / v6e: 128 MiB VMEM
        input_budget = 48 * _MIB
        target_block = 8 * _MIB
    tb = int(min(input_budget // max(per_row, 1),
                 target_block // max(row_bytes, 1)))
    if tb >= batch:
        return batch                       # full-dim block is always layout-legal
    # dtype-aware sublane packing: f32 -> 8 rows, bf16 -> 16, int8/fp8 -> 32.
    mult = 8 * max(1, 4 // max(itemsize, 1))
    return max(mult, (tb // mult) * mult)
    # NOTE: extremely large feature dims would also need tiling over D.


def triplet_loss(anchor, positive, negative, margin=1.0, size_average=True, *,
                 tile_rows=None, num_splits=None):
    """Pallas TPU triplet loss (squared-L2, as in the PyTorch module).

    Inputs: (B, D) arrays (f32 or bf16 -- bf16 halves HBM traffic and is the
    single biggest win on this bandwidth-bound kernel; math is f32 in-kernel).
    Returns a scalar f32: mean over B if size_average else sum.
    """
    assert anchor.shape == positive.shape == negative.shape
    assert anchor.ndim == 2
    B, D = anchor.shape
    itemsize = anchor.dtype.itemsize

    vmem_bytes = _tpu_vmem_capacity()
    if tile_rows is None:
        tile_rows = _pick_tile_rows(B, D, itemsize, vmem_bytes)
    tile_rows = min(int(tile_rows), B)

    steps_total = -(-B // tile_rows)       # ceil div (Python ints)

    if num_splits is None:
        cores = _tpu_num_tensorcores()
        num_splits = cores if (cores > 1 and steps_total >= 2) else 1
    num_splits = max(1, min(int(num_splits), steps_total))
    # Avoid clamped tail-block re-fetches: only split when steps divide evenly.
    while steps_total % num_splits != 0:
        num_splits -= 1
    steps_per_split = steps_total // num_splits

    # Mask needed only when the last batch block is partial.
    need_mask = (steps_total * tile_rows) != B

    def in_map(s, i):
        return (s * steps_per_split + i, 0)

    in_spec = pl.BlockSpec((tile_rows, D), in_map)
    out_spec = pl.BlockSpec((1, 1, 1), lambda s, i: (s, 0, 0))

    kernel = functools.partial(
        _triplet_loss_kernel,
        margin=float(margin),
        batch=B,
        tile_rows=tile_rows,
        steps_per_split=steps_per_split,
        need_mask=need_mask,
    )

    vmem_limit = 32 * _MIB if vmem_bytes <= 64 * _MIB else 64 * _MIB

    partials = pl.pallas_call(
        kernel,
        out_shape=jax.ShapeDtypeStruct((num_splits, 1, 1), jnp.float32),
        grid_spec=pltpu.PrefetchScalarGridSpec(
            num_scalar_prefetch=0,
            grid=(num_splits, steps_per_split),
            in_specs=[in_spec, in_spec, in_spec],
            out_specs=out_spec,
        ),
        compiler_params=pltpu.CompilerParams(
            # TODO(synk): if an xprof/bundle check on v7x shows both splits on
            # one TensorCore, switch the leading axis to pltpu.CORE_PARALLEL.
            dimension_semantics=("parallel", "arbitrary"),
            vmem_limit_bytes=vmem_limit,
        ),
        cost_estimate=pl.CostEstimate(
            flops=7 * B * D,
            transcendentals=0,
            bytes_accessed=3 * B * D * itemsize + num_splits * 4,
        ),
    )(anchor, positive, negative)

    total = jnp.sum(partials)
    return total / jnp.float32(B) if size_average else total


def _triplet_loss_ref(anchor, positive, negative, margin=1.0, size_average=True):
    dp = jnp.sum((anchor - positive) ** 2, axis=1)
    dn = jnp.sum((anchor - negative) ** 2, axis=1)
    losses = jnp.maximum(dp - dn + margin, 0.0)
    return jnp.mean(losses) if size_average else jnp.sum(losses)


if __name__ == "__main__":
    key = jax.random.PRNGKey(0)
    k1, k2, k3 = jax.random.split(key, 3)

    # --- small case matching the module spec: (B, D) embeddings ---
    B, D = 8, 32
    anchor = jax.random.normal(k1, (B, D), dtype=jnp.float32)
    positive = jax.random.normal(k2, (B, D), dtype=jnp.float32)
    negative = jax.random.normal(k3, (B, D), dtype=jnp.float32)

    out = jax.block_until_ready(
        triplet_loss(anchor, positive, negative, margin=1.0, size_average=True))
    ref = _triplet_loss_ref(anchor, positive, negative, 1.0, True)
    assert jnp.allclose(out, ref, atol=1e-4, rtol=1e-4), (out, ref)

    out_sum = jax.block_until_ready(
        triplet_loss(anchor, positive, negative, margin=1.0, size_average=False))
    ref_sum = _triplet_loss_ref(anchor, positive, negative, 1.0, False)
    assert jnp.allclose(out_sum, ref_sum, atol=1e-4, rtol=1e-4), (out_sum, ref_sum)

    # --- tiled, 2-split, ragged-tail path (even step split + tail masking) ---
    B2, D2 = 50, 128
    a2 = jax.random.normal(k1, (B2, D2), dtype=jnp.float32)
    p2 = jax.random.normal(k2, (B2, D2), dtype=jnp.float32)
    n2 = jax.random.normal(k3, (B2, D2), dtype=jnp.float32)
    out2 = jax.block_until_ready(
        triplet_loss(a2, p2, n2, margin=0.5, size_average=True,
                     tile_rows=16, num_splits=2))
    ref2 = _triplet_loss_ref(a2, p2, n2, 0.5, True)
    assert jnp.allclose(out2, ref2, atol=1e-3, rtol=1e-4), (out2, ref2)

    # Odd step count + requested 2 splits -> falls back to a single split
    # (no clamped tail-block re-fetch), tail rows masked in-kernel.
    B3 = 37
    a3, p3, n3 = a2[:B3], p2[:B3], n2[:B3]
    out3 = jax.block_until_ready(
        triplet_loss(a3, p3, n3, margin=1.0, size_average=False,
                     tile_rows=8, num_splits=2))
    ref3 = _triplet_loss_ref(a3, p3, n3, 1.0, False)
    assert jnp.allclose(out3, ref3, atol=1e-3, rtol=1e-4), (out3, ref3)

    # bf16 inputs (halves HBM traffic); math upcast to f32 inside the kernel.
    ab, pb, nb = (x.astype(jnp.bfloat16) for x in (a2, p2, n2))
    out4 = jax.block_until_ready(
        triplet_loss(ab, pb, nb, margin=1.0, size_average=True, tile_rows=16))
    ref4 = _triplet_loss_ref(ab.astype(jnp.float32), pb.astype(jnp.float32),
                             nb.astype(jnp.float32), 1.0, True)
    assert jnp.allclose(out4, ref4, atol=1e-3, rtol=1e-3), (out4, ref4)

    print("KERNEL_OK")
</pallas_src>

<mosaic_0001>
module attributes {stable_mosaic.version = 11 : i64} {
  func.func @_triplet_loss_kernel(%arg0: i32, %arg1: i32, %arg2: memref<8x32xf32, #tpu.memory_space<vmem>>, %arg3: memref<8x32xf32, #tpu.memory_space<vmem>>, %arg4: memref<8x32xf32, #tpu.memory_space<vmem>>, %arg5: memref<1x1x1xf32, #tpu.memory_space<vmem>>) attributes {dimension_semantics = [#tpu.dimension_semantics<parallel>, #tpu.dimension_semantics<arbitrary>], iteration_bounds = array<i64: 1, 1>, scalar_prefetch = 0 : i64, scratch_operands = 0 : i64, tpu.core_type = #tpu.core_type<tc>, window_params = [{transform_indices = @transform_0, window_bounds = array<i64: 8, 32>}, {transform_indices = @transform_1, window_bounds = array<i64: 8, 32>}, {transform_indices = @transform_2, window_bounds = array<i64: 8, 32>}, {transform_indices = @transform_3, window_bounds = array<i64: 1, 1, 1>}]} {
    %c0_i32 = arith.constant 0 : i32
    %0 = arith.cmpi eq, %arg1, %c0_i32 : i32
    %1 = arith.extui %0 : i1 to i32
    %c0_i32_0 = arith.constant 0 : i32
    %2 = arith.cmpi ne, %1, %c0_i32_0 : i32
    scf.if %2 {
      %cst_16 = arith.constant 0.000000e+00 : f32
      %24 = vector.broadcast %cst_16 : f32 to vector<1x1x1xf32>
      %c0_17 = arith.constant 0 : index
      %c0_18 = arith.constant 0 : index
      %c0_19 = arith.constant 0 : index
      %25 = vector.load %arg5[%c0_17, %c0_18, %c0_19] : memref<1x1x1xf32, #tpu.memory_space<vmem>>, vector<1x1x1xf32>
      tpu.vector_store %arg5[%c0_17, %c0_18, %c0_19], %24 {strides = array<i32>} : memref<1x1x1xf32, #tpu.memory_space<vmem>>, vector<1x1x1xf32>,
    } else {
    }
    %c0 = arith.constant 0 : index
    %c0_1 = arith.constant 0 : index
    %3 = vector.load %arg2[%c0, %c0_1] : memref<8x32xf32, #tpu.memory_space<vmem>>, vector<8x32xf32>
    %c0_2 = arith.constant 0 : index
    %c0_3 = arith.constant 0 : index
    %4 = vector.load %arg3[%c0_2, %c0_3] : memref<8x32xf32, #tpu.memory_space<vmem>>, vector<8x32xf32>
    %c0_4 = arith.constant 0 : index
    %c0_5 = arith.constant 0 : index
    %5 = vector.load %arg4[%c0_4, %c0_5] : memref<8x32xf32, #tpu.memory_space<vmem>>, vector<8x32xf32>
    %6 = arith.subf %5, %4 : vector<8x32xf32>
    %cst = arith.constant 2.000000e+00 : f32
    %7 = vector.broadcast %cst : f32 to vector<8x32xf32>
    %8 = arith.mulf %7, %3 : vector<8x32xf32>
    %9 = arith.subf %8, %4 : vector<8x32xf32>
    %10 = arith.subf %9, %5 : vector<8x32xf32>
    %11 = arith.mulf %6, %10 : vector<8x32xf32>
    %cst_6 = arith.constant dense<0.000000e+00> : vector<8xf32>
    %12 = vector.multi_reduction <add>, %11, %cst_6 [1] : vector<8x32xf32> to vector<8xf32>
    %13 = vector.shape_cast %12 : vector<8xf32> to vector<8x1xf32>
    %cst_7 = arith.constant 1.000000e+00 : f32
    %14 = vector.broadcast %cst_7 : f32 to vector<8x1xf32>
    %15 = arith.addf %13, %14 : vector<8x1xf32>
    %cst_8 = arith.constant 0.000000e+00 : f32
    %16 = vector.broadcast %cst_8 : f32 to vector<8x1xf32>
    %17 = arith.maximumf %15, %16 : vector<8x1xf32>
    %c0_9 = arith.constant 0 : index
    %c0_10 = arith.constant 0 : index
    %c0_11 = arith.constant 0 : index
    %18 = vector.load %arg5[%c0_9, %c0_10, %c0_11] : memref<1x1x1xf32, #tpu.memory_space<vmem>>, vector<1x1x1xf32>
    %cst_12 = arith.constant dense<0.000000e+00> : vector<1xf32>
    %19 = vector.multi_reduction <add>, %17, %cst_12 [0] : vector<8x1xf32> to vector<1xf32>
    %20 = vector.shape_cast %19 : vector<1xf32> to vector<1x1xf32>
    %21 = vector.shape_cast %20 : vector<1x1xf32> to vector<1x1x1xf32>
    %22 = arith.addf %18, %21 : vector<1x1x1xf32>
    %c0_13 = arith.constant 0 : index
    %c0_14 = arith.constant 0 : index
    %c0_15 = arith.constant 0 : index
    %23 = vector.load %arg5[%c0_13, %c0_14, %c0_15] : memref<1x1x1xf32, #tpu.memory_space<vmem>>, vector<1x1x1xf32>
    tpu.vector_store %arg5[%c0_13, %c0_14, %c0_15], %22 {strides = array<i32>} : memref<1x1x1xf32, #tpu.memory_space<vmem>>, vector<1x1x1xf32>,
    return
  }
  func.func @transform_0(%arg0: i32, %arg1: i32) -> (i32, i32) {
    %c1_i32 = arith.constant 1 : i32
    %0 = arith.muli %arg0, %c1_i32 : i32
    %1 = arith.addi %0, %arg1 : i32
    %c0_i32 = arith.constant 0 : i32
    %c0_i32_0 = arith.constant 0 : i32
    return %1, %c0_i32 : i32, i32
  }
  func.func @transform_1(%arg0: i32, %arg1: i32) -> (i32, i32) {
    %c1_i32 = arith.constant 1 : i32
    %0 = arith.muli %arg0, %c1_i32 : i32
    %1 = arith.addi %0, %arg1 : i32
    %c0_i32 = arith.constant 0 : i32
    %c0_i32_0 = arith.constant 0 : i32
    return %1, %c0_i32 : i32, i32
  }
  func.func @transform_2(%arg0: i32, %arg1: i32) -> (i32, i32) {
    %c1_i32 = arith.constant 1 : i32
    %0 = arith.muli %arg0, %c1_i32 : i32
    %1 = arith.addi %0, %arg1 : i32
    %c0_i32 = arith.constant 0 : i32
    %c0_i32_0 = arith.constant 0 : i32
    return %1, %c0_i32 : i32, i32
  }
  func.func @transform_3(%arg0: i32, %arg1: i32) -> (i32, i32, i32) {
    %c0_i32 = arith.constant 0 : i32
    %c0_i32_0 = arith.constant 0 : i32
    %c0_i32_1 = arith.constant 0 : i32
    return %arg0, %c0_i32, %c0_i32_0 : i32, i32, i32
  }
}

</mosaic_0001>

<llo_original>
// kernel: tpu_custom_call.1
$region0: #{tpu_custom_call.1}
  #allocation0 [shape = 'u32[]', space=smem, size = 0x4, offset = 0x4, fixed_abs, tag = 'smem constant byte address 0x4 - core index']
  #allocation1 [shape = 'u32[144,128]{1,0:T(1,128)}', space=vmem, size = 0x12000, scoped, tag = 'internal scratch']
  %s0 = inlined_call_operand.hbm [shape: f32[8,32], index: 0, kind: input, shape index: {}]
  %s1 = inlined_call_operand.hbm [shape: f32[8,32], index: 1, kind: input, shape index: {}]
  %s2 = inlined_call_operand.hbm [shape: f32[8,32], index: 2, kind: input, shape index: {}]
  %s3 = inlined_call_operand.hbm [shape: f32[1,1,1], index: 3, kind: output, shape index: {}]
  %s4 = sld [smem:[#allocation0]]
  $region38: #{tpu_custom_call.1} parent=0
    _
  %s6 = ssub.s32 1, %s4
  %s7 = scalar_select 0, %s6, %s4
  $region1: #{tpu_custom_call.1} parent=0
    #allocation2 [shape = 'u8[4096]{0}', space=vmem, size = 0x1000, scoped, tag = 'input window, operand 0, single buffered']
    #allocation3 [shape = 's32[1]{0}', space=sflag, size = 0x4, scoped, tag = 'scoped memory for tpu_custom_call.1']
    #allocation4 [shape = 's32[1]{0}', space=sflag, size = 0x4, scoped, tag = 'scoped memory for tpu_custom_call.1']
    #allocation5 [shape = 'u8[4096]{0}', space=vmem, size = 0x1000, scoped, tag = 'input window, operand 1, single buffered']
    #allocation6 [shape = 's32[1]{0}', space=sflag, size = 0x4, scoped, tag = 'scoped memory for tpu_custom_call.1']
    #allocation7 [shape = 'u8[4096]{0}', space=vmem, size = 0x1000, scoped, tag = 'input window, operand 2, single buffered']
    #allocation8 [shape = 'u8[512]{0}', space=vmem, size = 0x400, scoped, tag = 'output window, operand 0, single buffered']
    %8 = vsyncpa [#allocation3], 0
    %9 = vsyncpa [#allocation6], 0
    %10 = vsyncpa [#allocation4], 0
    // Predicated region
    $region2: #{tpu_custom_call.1} parent=1 // pred_check
      _
    $region3: #{tpu_custom_call.1} parent=1 // pred_check_branch
      %12 = sbr.rel (0) target = $region5
    $region4: #{tpu_custom_call.1} parent=1 // pred_region
      %s13 = sadd.s32 0, 0
      %s15 = ssub.s32 128, 128
      %16 = vsyncadd [#allocation3], %s15
      %s17 = smul.addr %s13, 128
      %s18 = scalar_lea.hbm %s0, %s17
      %s20 = sshll.u32 [#allocation2], 4
      %s21 = int_to_ptr.vmem [resolvable:$true] %s20
      %23 = dma.hbm_to_vmem [thread:$0]  %s18, 128, %s21, [#allocation3]
    $region5: #{tpu_custom_call.1} parent=1 // pred_fallthru
      _
    // Predicated region
    $region6: #{tpu_custom_call.1} parent=1 // pred_check
      _
    $region7: #{tpu_custom_call.1} parent=1 // pred_check_branch
      %25 = sbr.rel (0) target = $region9
    $region8: #{tpu_custom_call.1} parent=1 // pred_region
      %s26 = sadd.s32 0, 0
      %s28 = ssub.s32 128, 128
      %29 = vsyncadd [#allocation6], %s28
      %s30 = smul.addr %s26, 128
      %s31 = scalar_lea.hbm %s1, %s30
      %s33 = sshll.u32 [#allocation5], 4
      %s34 = int_to_ptr.vmem [resolvable:$true] %s33
      %36 = dma.hbm_to_vmem [thread:$0]  %s31, 128, %s34, [#allocation6]
    $region9: #{tpu_custom_call.1} parent=1 // pred_fallthru
      _
    // Predicated region
    $region10: #{tpu_custom_call.1} parent=1 // pred_check
      _
    $region11: #{tpu_custom_call.1} parent=1 // pred_check_branch
      %38 = sbr.rel (0) target = $region13
    $region12: #{tpu_custom_call.1} parent=1 // pred_region
      %s39 = sadd.s32 0, 0
      %s41 = ssub.s32 128, 128
      %42 = vsyncadd [#allocation6], %s41
      %s43 = smul.addr %s39, 128
      %s44 = scalar_lea.hbm %s2, %s43
      %s46 = sshll.u32 [#allocation7], 4
      %s47 = int_to_ptr.vmem [resolvable:$true] %s46
      %49 = dma.hbm_to_vmem [thread:$0]  %s44, 128, %s47, [#allocation6]
    $region13: #{tpu_custom_call.1} parent=1 // pred_fallthru
      _
    // Predicated region
    $region14: #{tpu_custom_call.1} parent=1 // pred_check
      _
    $region15: #{tpu_custom_call.1} parent=1 // pred_check_branch
      %51 = sbr.rel (0) target = $region17
    $region16: #{tpu_custom_call.1} parent=1 // pred_region
      %52 = dma.done [#allocation3], 128
    $region17: #{tpu_custom_call.1} parent=1 // pred_fallthru
      _
    // Predicated region
    $region18: #{tpu_custom_call.1} parent=1 // pred_check
      _
    $region19: #{tpu_custom_call.1} parent=1 // pred_check_branch
      %54 = sbr.rel (0) target = $region21
    $region20: #{tpu_custom_call.1} parent=1 // pred_region
      %55 = dma.done [#allocation6], 128
    $region21: #{tpu_custom_call.1} parent=1 // pred_fallthru
      _
    // Predicated region
    $region22: #{tpu_custom_call.1} parent=1 // pred_check
      _
    $region23: #{tpu_custom_call.1} parent=1 // pred_check_branch
      %57 = sbr.rel (0) target = $region25
    $region24: #{tpu_custom_call.1} parent=1 // pred_region
      %58 = dma.done [#allocation6], 128
    $region25: #{tpu_custom_call.1} parent=1 // pred_fallthru
      _
    %s59 = sadd.s32 0, 0
    %s60 = sadd.s32 0, 0
    %s61 = sadd.s32 0, 0
    %p62 = scmp.eq.s32.totalorder 0, 0
    // Predicated region
    $region26: #{tpu_custom_call.1} parent=1 // pred_check
      %p63 = pneg %p62
    $region27: #{tpu_custom_call.1} parent=1 // pred_check_branch
      %65 = sbr.rel (%p63) target = $region29
    $region28: #{tpu_custom_call.1} parent=1 // pred_region
      %vm66 = vcmask 0
      %67 = vst.msk [vmem:[#allocation8] sm:$0x1] %vm66, 0.0
    $region29: #{tpu_custom_call.1} parent=1 // pred_fallthru
      _
    %v68 = vld [vmem:[#allocation2] sm:$0xff]
    %v69 = vld [vmem:[#allocation5] sm:$0xff]
    %v70 = vld [vmem:[#allocation7] sm:$0xff]
    %v71 = vsub.f32 %v70, %v69
    %v72 = vmul.f32 %v68, 2.0
    %v73 = vsub.f32 %v72, %v69
    %v74 = vsub.f32 %v73, %v70
    %v75 = vmul.f32 %v71, %v74
    %vm76 = vcmask 261120
    %v77 = vsel %vm76, %v75, 0.0
    %78 = vadd.xlane.f32.xlu0 %v77
    %v79 = vpop.xlane.xlu0 %78
    %v80 = vadd.f32 %v79, 1.0
    %v81 = vmax.f32 %v80, 0.0
    %v82 = vld [vmem:[#allocation8] sm:$0x1]
    %v83 = vrot.slane %v81, 4
    %v84 = vadd.f32 %v81, %v83
    %v85 = vrot.slane %v84, 2
    %v86 = vadd.f32 %v84, %v85
    %v87 = vrot.slane %v86, 1
    %v88 = vadd.f32 %v86, %v87
    %v89 = vadd.f32 %v82, %v88
    %vm90 = vcmask 0
    %91 = vst.msk [vmem:[#allocation8] sm:$0x1] %vm90, %v89
    // Predicated region
    $region30: #{tpu_custom_call.1} parent=1 // pred_check
      _
    $region31: #{tpu_custom_call.1} parent=1 // pred_check_branch
      %93 = sbr.rel (0) target = $region33
    $region32: #{tpu_custom_call.1} parent=1 // pred_region
      %s95 = ssub.s32 16, 16
      %96 = vsyncadd [#allocation4], %s95
      %s98 = sshll.u32 [#allocation8], 4
      %s99 = int_to_ptr.vmem [resolvable:$true] %s98
      %101 = dma.vmem_to_hbm [thread:$0]  %s99, 16, %s3, [#allocation4]
    $region33: #{tpu_custom_call.1} parent=1 // pred_fallthru
      _
    // Predicated region
    $region34: #{tpu_custom_call.1} parent=1 // pred_check
      _
    $region35: #{tpu_custom_call.1} parent=1 // pred_check_branch
      %103 = sbr.rel (0) target = $region37
    $region36: #{tpu_custom_call.1} parent=1 // pred_region
      %104 = dma.done [#allocation4], 16
    $region37: #{tpu_custom_call.1} parent=1 // pred_fallthru
      _
    %105 = vsyncpa [#allocation3], 1
    %106 = vsyncpa [#allocation6], 1
    %107 = vsyncpa [#allocation4], 1

</llo_original>
